<compile_context>
chip_gen: v6e
topology: v6e:2x2x1
jax: 0.10.0
libtpu: 0.0.40
codegen_flags: <defaults>
</compile_context>

<pallas_src>
import math

import jax
import jax.numpy as jnp
from jax import lax
from jax.experimental import pallas as pl
from jax.experimental.pallas import tpu as pltpu  # noqa: F401  (TPU backend)

# ---------------- config (small, BERT-like) ----------------
B = 2            # batch
S = 8            # sequence length
H = 32           # hidden_size
NH = 4           # num_attention_heads
HD = H // NH     # attention_head_size
I = 64           # intermediate_size
LN_EPS = 1e-12   # layer_norm_eps (BERT default)
BS = B * S       # flattened rows
SH = NH * BS     # stacked-heads rows (= 64)

# constants-slab row layout (each row is 128 lanes, f32)
#   row 0 : bqkv[0:96]   row 1 : bo[0:32]    row 2 : ln1_g   row 3 : ln1_b
#   row 4 : bi[0:64]     row 5 : b2[0:32]    row 6 : ln2_g   row 7 : ln2_b
#   rows 8..71, lanes 0..63 : additive attention-mask bias (0 / -1e30)
C_ROWS = 8 + SH


def _layer_norm(x, gamma, beta, eps):
    # PyTorch nn.LayerNorm: biased variance over last dim (f32 math).
    mean = jnp.mean(x, axis=-1, keepdims=True)
    var = jnp.mean((x - mean) ** 2, axis=-1, keepdims=True)
    return (x - mean) * lax.rsqrt(var + eps) * gamma + beta


def _gelu_exact(x):
    # F.gelu default (erf-based, exact)
    return 0.5 * x * (1.0 + lax.erf(x * (1.0 / math.sqrt(2.0))))


def bert_layer_kernel(
    x_ref,     # (BS, H)        f32
    w_ref,     # (H, 256)       bf16   [wqkv | wo | wi | w2^T]
    c_ref,     # (C_ROWS, 128)  f32    packed biases / LN params / mask bias
    out_ref,   # (BS, H)        f32
):
    x = x_ref[...]                                                      # (BS, H) f32

    # ---- fused Q/K/V projection: one bf16 MXU matmul, f32 accumulate ----
    qkv = jnp.dot(x.astype(jnp.bfloat16), w_ref[:, 0:3 * H],
                  preferred_element_type=jnp.float32) + c_ref[0:1, 0:3 * H]  # (BS, 3H)
    qkv_bf = qkv.astype(jnp.bfloat16)

    # ---- stacked-heads layout: rows ordered (head, batch, seq) -> (SH, HD) ----
    qs = jnp.concatenate([qkv_bf[:, h * HD:(h + 1) * HD] for h in range(NH)], axis=0)
    ks = jnp.concatenate([qkv_bf[:, H + h * HD:H + (h + 1) * HD] for h in range(NH)], axis=0)
    vs = jnp.concatenate([qkv_bf[:, 2 * H + h * HD:2 * H + (h + 1) * HD] for h in range(NH)], axis=0)

    # ---- single score matmul for all heads & batches (contract HD on both) ----
    scores = lax.dot_general(qs, ks, (((1,), (1,)), ((), ())),
                             preferred_element_type=jnp.float32)        # (SH, SH) f32
    # scale in f32, then add the precomputed block-diagonal additive mask bias
    scores = scores * (1.0 / math.sqrt(HD)) + c_ref[8:8 + SH, 0:SH]

    m = jnp.max(scores, axis=-1, keepdims=True)
    e = jnp.exp(scores - m)                                             # EUP exp (f32)
    probs = e / jnp.sum(e, axis=-1, keepdims=True)                      # exact divide
    # dropout(attention_probs): identity in eval mode

    ctx_s = jnp.dot(probs.astype(jnp.bfloat16), vs,
                    preferred_element_type=jnp.float32)                 # (SH, HD) f32
    # restack heads back onto the hidden dim: (SH, HD) -> (BS, H)
    ctx = jnp.concatenate([ctx_s[h * BS:(h + 1) * BS, :] for h in range(NH)], axis=1)

    # ---- attention output dense + residual + LayerNorm ----
    attn = jnp.dot(ctx.astype(jnp.bfloat16), w_ref[:, 3 * H:4 * H],
                   preferred_element_type=jnp.float32) + c_ref[1:2, 0:H]
    attn = _layer_norm(attn + x, c_ref[2:3, 0:H], c_ref[3:4, 0:H], LN_EPS)   # (BS, H)

    # ---- intermediate dense + exact GELU ----
    inter = jnp.dot(attn.astype(jnp.bfloat16), w_ref[:, 4 * H:4 * H + I],
                    preferred_element_type=jnp.float32) + c_ref[4:5, 0:I]
    inter = _gelu_exact(inter)                                          # (BS, I) f32

    # ---- output dense (w2 packed transposed -> contract last dims) + residual + LN ----
    out = lax.dot_general(inter.astype(jnp.bfloat16), w_ref[:, 4 * H + I:4 * H + 2 * I],
                          (((1,), (1,)), ((), ())),
                          preferred_element_type=jnp.float32) + c_ref[5:6, 0:H]
    out = _layer_norm(out + attn, c_ref[6:7, 0:H], c_ref[7:8, 0:H], LN_EPS)

    out_ref[...] = out.astype(out_ref.dtype)


def prepare_params(p):
    """One-time host-side packing: weights -> one bf16 lane-dense slab,
    biases/LN params/mask -> one f32 constants slab."""
    wqkv = jnp.concatenate([p["wq"], p["wk"], p["wv"]], axis=1)               # (H, 3H)
    w_slab = jnp.concatenate(
        [wqkv, p["wo"], p["wi"], p["w2"].T], axis=1).astype(jnp.bfloat16)     # (H, 256)

    consts = jnp.zeros((C_ROWS, 128), jnp.float32)
    bqkv = jnp.concatenate([p["bq"], p["bk"], p["bv"]], axis=1)[0]            # (3H,)
    consts = consts.at[0, 0:3 * H].set(bqkv)
    consts = consts.at[1, 0:H].set(p["bo"][0])
    consts = consts.at[2, 0:H].set(p["ln1_g"][0])
    consts = consts.at[3, 0:H].set(p["ln1_b"][0])
    consts = consts.at[4, 0:I].set(p["bi"][0])
    consts = consts.at[5, 0:H].set(p["b2"][0])
    consts = consts.at[6, 0:H].set(p["ln2_g"][0])
    consts = consts.at[7, 0:H].set(p["ln2_b"][0])

    # additive mask bias for the stacked-heads layout: rows/cols ordered
    # (head, batch, seq) -> valid iff same head AND same batch, i.e. same block of S.
    blk = jnp.arange(SH) // S
    mask_bias = jnp.where(blk[:, None] == blk[None, :], 0.0, -1e30).astype(jnp.float32)
    consts = consts.at[8:8 + SH, 0:SH].set(mask_bias)
    return {"w": w_slab, "c": consts}


def bert_layer(x, packed):
    """x: (B, S, H) float32.  packed: output of prepare_params()."""
    x2 = x.reshape(BS, H)                                     # free, contiguous
    out = pl.pallas_call(
        bert_layer_kernel,
        out_shape=jax.ShapeDtypeStruct((BS, H), x.dtype),
        # Gridless: single fused program, all 3 operands resident in VMEM (<60 KiB).
    )(x2, packed["w"], packed["c"])
    return out.reshape(B, S, H)                               # free, contiguous


def init_params(key):
    """Deterministic synthetic parameters. nn.Linear weight is (out, in); we store
    the transposed (in, out) form so the kernel computes x @ W + b."""
    ks = jax.random.split(key, 12)
    scale = 0.02
    return {
        "wq": scale * jax.random.normal(ks[0], (H, H), jnp.float32),
        "bq": scale * jax.random.normal(ks[1], (1, H), jnp.float32),
        "wk": scale * jax.random.normal(ks[2], (H, H), jnp.float32),
        "bk": scale * jax.random.normal(ks[3], (1, H), jnp.float32),
        "wv": scale * jax.random.normal(ks[4], (H, H), jnp.float32),
        "bv": scale * jax.random.normal(ks[5], (1, H), jnp.float32),
        "wo": scale * jax.random.normal(ks[6], (H, H), jnp.float32),
        "bo": scale * jax.random.normal(ks[7], (1, H), jnp.float32),
        "ln1_g": jnp.ones((1, H), jnp.float32),
        "ln1_b": jnp.zeros((1, H), jnp.float32),
        "wi": scale * jax.random.normal(ks[8], (H, I), jnp.float32),
        "bi": scale * jax.random.normal(ks[9], (1, I), jnp.float32),
        "w2": scale * jax.random.normal(ks[10], (I, H), jnp.float32),
        "b2": scale * jax.random.normal(ks[11], (1, H), jnp.float32),
        "ln2_g": jnp.ones((1, H), jnp.float32),
        "ln2_b": jnp.zeros((1, H), jnp.float32),
    }


def bert_layer_ref(x, p):
    """Pure-JAX f32 reference (mirrors the PyTorch module, eval mode)."""
    def ln(y, g, b):
        m = jnp.mean(y, -1, keepdims=True)
        v = jnp.mean((y - m) ** 2, -1, keepdims=True)
        return (y - m) / jnp.sqrt(v + LN_EPS) * g + b

    q = x @ p["wq"] + p["bq"]
    k = x @ p["wk"] + p["bk"]
    v = x @ p["wv"] + p["bv"]
    split = lambda t: t.reshape(B, S, NH, HD).transpose(0, 2, 1, 3)
    qh, kh, vh = split(q), split(k), split(v)
    scores = jnp.einsum("bhqd,bhkd->bhqk", qh, kh) / math.sqrt(HD)
    probs = jax.nn.softmax(scores, axis=-1)
    ctx = jnp.einsum("bhqk,bhkd->bhqd", probs, vh).transpose(0, 2, 1, 3).reshape(B, S, H)
    attn = ln(ctx @ p["wo"] + p["bo"] + x, p["ln1_g"], p["ln1_b"])
    pre = attn @ p["wi"] + p["bi"]
    inter = 0.5 * pre * (1.0 + lax.erf(pre / math.sqrt(2.0)))
    return ln(inter @ p["w2"] + p["b2"] + attn, p["ln2_g"], p["ln2_b"])


if __name__ == "__main__":
    key = jax.random.PRNGKey(0)
    kx, kp = jax.random.split(key)
    x = jax.random.normal(kx, (B, S, H), jnp.float32)
    params = init_params(kp)

    packed = jax.block_until_ready(prepare_params(params))   # one-time packing

    out = bert_layer(x, packed)
    out = jax.block_until_ready(out)

    ref = bert_layer_ref(x, params)
    assert out.shape == (B, S, H)
    max_err = float(jnp.max(jnp.abs(out - ref)))
    # Tolerance covers bf16 MXU inputs (f32 accumulation); softmax/LN/GELU are f32,
    # scale & divide are exact f32.
    assert jnp.allclose(out, ref, atol=2e-2, rtol=2e-2), max_err
    print("KERNEL_OK")
</pallas_src>

<mosaic_0001>
module attributes {stable_mosaic.version = 11 : i64} {
  func.func @bert_layer_kernel(%arg0: memref<16x32xf32, #tpu.memory_space<vmem>>, %arg1: memref<32x256xbf16, #tpu.memory_space<vmem>>, %arg2: memref<72x128xf32, #tpu.memory_space<vmem>>, %arg3: memref<16x32xf32, #tpu.memory_space<vmem>>) attributes {dimension_semantics = [], scalar_prefetch = 0 : i64, scratch_operands = 0 : i64, tpu.core_type = #tpu.core_type<tc>} {
    %c0 = arith.constant 0 : index
    %c0_0 = arith.constant 0 : index
    %0 = vector.load %arg0[%c0, %c0_0] : memref<16x32xf32, #tpu.memory_space<vmem>>, vector<16x32xf32>
    %1 = arith.truncf %0 : vector<16x32xf32> to vector<16x32xbf16>
    %c0_1 = arith.constant 0 : index
    %c0_2 = arith.constant 0 : index
    %2 = vector.load %arg1[%c0_1, %c0_2] : memref<32x256xbf16, #tpu.memory_space<vmem>>, vector<32x96xbf16>
    %cst = arith.constant dense<0.000000e+00> : vector<16x96xf32>
    %3 = tpu.matmul %1, %2, %cst {dimension_numbers = #tpu.dot_dimension_numbers<[1], [0], [0], [1], [0, 0, 1, 1], [], []>} : vector<16x32xbf16>, vector<32x96xbf16>, vector<16x96xf32> -> vector<16x96xf32>
    %c0_3 = arith.constant 0 : index
    %c0_4 = arith.constant 0 : index
    %4 = vector.load %arg2[%c0_3, %c0_4] : memref<72x128xf32, #tpu.memory_space<vmem>>, vector<1x96xf32>
    %5 = vector.broadcast %4 : vector<1x96xf32> to vector<16x96xf32>
    %6 = arith.addf %3, %5 : vector<16x96xf32>
    %7 = arith.truncf %6 : vector<16x96xf32> to vector<16x96xbf16>
    %8 = vector.extract_strided_slice %7 {offsets = [0, 0], sizes = [16, 8], strides = [1, 1]} : vector<16x96xbf16> to vector<16x8xbf16>
    %9 = vector.extract_strided_slice %7 {offsets = [0, 8], sizes = [16, 8], strides = [1, 1]} : vector<16x96xbf16> to vector<16x8xbf16>
    %10 = vector.extract_strided_slice %7 {offsets = [0, 16], sizes = [16, 8], strides = [1, 1]} : vector<16x96xbf16> to vector<16x8xbf16>
    %11 = vector.extract_strided_slice %7 {offsets = [0, 24], sizes = [16, 8], strides = [1, 1]} : vector<16x96xbf16> to vector<16x8xbf16>
    %12 = tpu.concatenate %8, %9, %10, %11 in 0 : vector<16x8xbf16>, vector<16x8xbf16>, vector<16x8xbf16>, vector<16x8xbf16> -> vector<64x8xbf16>
    %13 = vector.extract_strided_slice %7 {offsets = [0, 32], sizes = [16, 8], strides = [1, 1]} : vector<16x96xbf16> to vector<16x8xbf16>
    %14 = vector.extract_strided_slice %7 {offsets = [0, 40], sizes = [16, 8], strides = [1, 1]} : vector<16x96xbf16> to vector<16x8xbf16>
    %15 = vector.extract_strided_slice %7 {offsets = [0, 48], sizes = [16, 8], strides = [1, 1]} : vector<16x96xbf16> to vector<16x8xbf16>
    %16 = vector.extract_strided_slice %7 {offsets = [0, 56], sizes = [16, 8], strides = [1, 1]} : vector<16x96xbf16> to vector<16x8xbf16>
    %17 = tpu.concatenate %13, %14, %15, %16 in 0 : vector<16x8xbf16>, vector<16x8xbf16>, vector<16x8xbf16>, vector<16x8xbf16> -> vector<64x8xbf16>
    %18 = vector.extract_strided_slice %7 {offsets = [0, 64], sizes = [16, 8], strides = [1, 1]} : vector<16x96xbf16> to vector<16x8xbf16>
    %19 = vector.extract_strided_slice %7 {offsets = [0, 72], sizes = [16, 8], strides = [1, 1]} : vector<16x96xbf16> to vector<16x8xbf16>
    %20 = vector.extract_strided_slice %7 {offsets = [0, 80], sizes = [16, 8], strides = [1, 1]} : vector<16x96xbf16> to vector<16x8xbf16>
    %21 = vector.extract_strided_slice %7 {offsets = [0, 88], sizes = [16, 8], strides = [1, 1]} : vector<16x96xbf16> to vector<16x8xbf16>
    %22 = tpu.concatenate %18, %19, %20, %21 in 0 : vector<16x8xbf16>, vector<16x8xbf16>, vector<16x8xbf16>, vector<16x8xbf16> -> vector<64x8xbf16>
    %cst_5 = arith.constant dense<0.000000e+00> : vector<64x64xf32>
    %23 = tpu.matmul %12, %17, %cst_5 {dimension_numbers = #tpu.dot_dimension_numbers<[1], [1], [0], [0], [0, 0, 1, 0], [], []>} : vector<64x8xbf16>, vector<64x8xbf16>, vector<64x64xf32> -> vector<64x64xf32>
    %cst_6 = arith.constant 0.353553385 : f32
    %24 = vector.broadcast %cst_6 : f32 to vector<64x64xf32>
    %25 = arith.mulf %23, %24 : vector<64x64xf32>
    %c8 = arith.constant 8 : index
    %c0_7 = arith.constant 0 : index
    %26 = vector.load %arg2[%c8, %c0_7] : memref<72x128xf32, #tpu.memory_space<vmem>>, vector<64x64xf32>
    %27 = arith.addf %25, %26 : vector<64x64xf32>
    %cst_8 = arith.constant dense<0xFF800000> : vector<64xf32>
    %28 = vector.multi_reduction <maximumf>, %27, %cst_8 [1] : vector<64x64xf32> to vector<64xf32>
    %29 = vector.shape_cast %28 : vector<64xf32> to vector<64x1xf32>
    %30 = vector.broadcast %29 : vector<64x1xf32> to vector<64x64xf32>
    %31 = arith.subf %27, %30 : vector<64x64xf32>
    %32 = math.exp %31 : vector<64x64xf32>
    %cst_9 = arith.constant dense<0.000000e+00> : vector<64xf32>
    %33 = vector.multi_reduction <add>, %32, %cst_9 [1] : vector<64x64xf32> to vector<64xf32>
    %34 = vector.shape_cast %33 : vector<64xf32> to vector<64x1xf32>
    %35 = vector.broadcast %34 : vector<64x1xf32> to vector<64x64xf32>
    %36 = arith.divf %32, %35 : vector<64x64xf32>
    %37 = arith.truncf %36 : vector<64x64xf32> to vector<64x64xbf16>
    %cst_10 = arith.constant dense<0.000000e+00> : vector<64x8xf32>
    %38 = tpu.matmul %37, %22, %cst_10 {dimension_numbers = #tpu.dot_dimension_numbers<[1], [0], [0], [1], [0, 0, 1, 1], [], []>} : vector<64x64xbf16>, vector<64x8xbf16>, vector<64x8xf32> -> vector<64x8xf32>
    %39 = vector.extract_strided_slice %38 {offsets = [0, 0], sizes = [16, 8], strides = [1, 1]} : vector<64x8xf32> to vector<16x8xf32>
    %40 = vector.extract_strided_slice %38 {offsets = [16, 0], sizes = [16, 8], strides = [1, 1]} : vector<64x8xf32> to vector<16x8xf32>
    %41 = vector.extract_strided_slice %38 {offsets = [32, 0], sizes = [16, 8], strides = [1, 1]} : vector<64x8xf32> to vector<16x8xf32>
    %42 = vector.extract_strided_slice %38 {offsets = [48, 0], sizes = [16, 8], strides = [1, 1]} : vector<64x8xf32> to vector<16x8xf32>
    %43 = tpu.concatenate %39, %40, %41, %42 in 1 : vector<16x8xf32>, vector<16x8xf32>, vector<16x8xf32>, vector<16x8xf32> -> vector<16x32xf32>
    %44 = arith.truncf %43 : vector<16x32xf32> to vector<16x32xbf16>
    %c0_11 = arith.constant 0 : index
    %c96 = arith.constant 96 : index
    %45 = vector.load %arg1[%c0_11, %c96] : memref<32x256xbf16, #tpu.memory_space<vmem>>, vector<32x32xbf16>
    %cst_12 = arith.constant dense<0.000000e+00> : vector<16x32xf32>
    %46 = tpu.matmul %44, %45, %cst_12 {dimension_numbers = #tpu.dot_dimension_numbers<[1], [0], [0], [1], [0, 0, 1, 1], [], []>} : vector<16x32xbf16>, vector<32x32xbf16>, vector<16x32xf32> -> vector<16x32xf32>
    %c1 = arith.constant 1 : index
    %c0_13 = arith.constant 0 : index
    %47 = vector.load %arg2[%c1, %c0_13] : memref<72x128xf32, #tpu.memory_space<vmem>>, vector<1x32xf32>
    %48 = vector.broadcast %47 : vector<1x32xf32> to vector<16x32xf32>
    %49 = arith.addf %46, %48 : vector<16x32xf32>
    %50 = arith.addf %49, %0 : vector<16x32xf32>
    %c2 = arith.constant 2 : index
    %c0_14 = arith.constant 0 : index
    %51 = vector.load %arg2[%c2, %c0_14] : memref<72x128xf32, #tpu.memory_space<vmem>>, vector<1x32xf32>
    %c3 = arith.constant 3 : index
    %c0_15 = arith.constant 0 : index
    %52 = vector.load %arg2[%c3, %c0_15] : memref<72x128xf32, #tpu.memory_space<vmem>>, vector<1x32xf32>
    %cst_16 = arith.constant dense<0.000000e+00> : vector<16xf32>
    %53 = vector.multi_reduction <add>, %50, %cst_16 [1] : vector<16x32xf32> to vector<16xf32>
    %54 = vector.shape_cast %53 : vector<16xf32> to vector<16x1xf32>
    %cst_17 = arith.constant 3.200000e+01 : f32
    %55 = vector.broadcast %cst_17 : f32 to vector<16x1xf32>
    %56 = arith.divf %54, %55 : vector<16x1xf32>
    %57 = vector.broadcast %56 : vector<16x1xf32> to vector<16x32xf32>
    %58 = arith.subf %50, %57 : vector<16x32xf32>
    %59 = arith.mulf %58, %58 : vector<16x32xf32>
    %cst_18 = arith.constant dense<0.000000e+00> : vector<16xf32>
    %60 = vector.multi_reduction <add>, %59, %cst_18 [1] : vector<16x32xf32> to vector<16xf32>
    %61 = vector.shape_cast %60 : vector<16xf32> to vector<16x1xf32>
    %cst_19 = arith.constant 3.200000e+01 : f32
    %62 = vector.broadcast %cst_19 : f32 to vector<16x1xf32>
    %63 = arith.divf %61, %62 : vector<16x1xf32>
    %64 = vector.broadcast %56 : vector<16x1xf32> to vector<16x32xf32>
    %65 = arith.subf %50, %64 : vector<16x32xf32>
    %cst_20 = arith.constant 9.99999996E-13 : f32
    %66 = vector.broadcast %cst_20 : f32 to vector<16x1xf32>
    %67 = arith.addf %63, %66 : vector<16x1xf32>
    %68 = math.rsqrt %67 : vector<16x1xf32>
    %69 = vector.broadcast %68 : vector<16x1xf32> to vector<16x32xf32>
    %70 = arith.mulf %65, %69 : vector<16x32xf32>
    %71 = vector.broadcast %51 : vector<1x32xf32> to vector<16x32xf32>
    %72 = arith.mulf %70, %71 : vector<16x32xf32>
    %73 = vector.broadcast %52 : vector<1x32xf32> to vector<16x32xf32>
    %74 = arith.addf %72, %73 : vector<16x32xf32>
    %75 = arith.truncf %74 : vector<16x32xf32> to vector<16x32xbf16>
    %c0_21 = arith.constant 0 : index
    %c128 = arith.constant 128 : index
    %76 = vector.load %arg1[%c0_21, %c128] : memref<32x256xbf16, #tpu.memory_space<vmem>>, vector<32x64xbf16>
    %cst_22 = arith.constant dense<0.000000e+00> : vector<16x64xf32>
    %77 = tpu.matmul %75, %76, %cst_22 {dimension_numbers = #tpu.dot_dimension_numbers<[1], [0], [0], [1], [0, 0, 1, 1], [], []>} : vector<16x32xbf16>, vector<32x64xbf16>, vector<16x64xf32> -> vector<16x64xf32>
    %c4 = arith.constant 4 : index
    %c0_23 = arith.constant 0 : index
    %78 = vector.load %arg2[%c4, %c0_23] : memref<72x128xf32, #tpu.memory_space<vmem>>, vector<1x64xf32>
    %79 = vector.broadcast %78 : vector<1x64xf32> to vector<16x64xf32>
    %80 = arith.addf %77, %79 : vector<16x64xf32>
    %cst_24 = arith.constant 5.000000e-01 : f32
    %81 = vector.broadcast %cst_24 : f32 to vector<16x64xf32>
    %82 = arith.mulf %81, %80 : vector<16x64xf32>
    %cst_25 = arith.constant 0.707106769 : f32
    %83 = vector.broadcast %cst_25 : f32 to vector<16x64xf32>
    %84 = arith.mulf %80, %83 : vector<16x64xf32>
    %85 = math.erf %84 : vector<16x64xf32>
    %cst_26 = arith.constant 1.000000e+00 : f32
    %86 = vector.broadcast %cst_26 : f32 to vector<16x64xf32>
    %87 = arith.addf %86, %85 : vector<16x64xf32>
    %88 = arith.mulf %82, %87 : vector<16x64xf32>
    %89 = arith.truncf %88 : vector<16x64xf32> to vector<16x64xbf16>
    %c0_27 = arith.constant 0 : index
    %c192 = arith.constant 192 : index
    %90 = vector.load %arg1[%c0_27, %c192] : memref<32x256xbf16, #tpu.memory_space<vmem>>, vector<32x64xbf16>
    %cst_28 = arith.constant dense<0.000000e+00> : vector<16x32xf32>
    %91 = tpu.matmul %89, %90, %cst_28 {dimension_numbers = #tpu.dot_dimension_numbers<[1], [1], [0], [0], [0, 0, 1, 0], [], []>} : vector<16x64xbf16>, vector<32x64xbf16>, vector<16x32xf32> -> vector<16x32xf32>
    %c5 = arith.constant 5 : index
    %c0_29 = arith.constant 0 : index
    %92 = vector.load %arg2[%c5, %c0_29] : memref<72x128xf32, #tpu.memory_space<vmem>>, vector<1x32xf32>
    %93 = vector.broadcast %92 : vector<1x32xf32> to vector<16x32xf32>
    %94 = arith.addf %91, %93 : vector<16x32xf32>
    %95 = arith.addf %94, %74 : vector<16x32xf32>
    %c6 = arith.constant 6 : index
    %c0_30 = arith.constant 0 : index
    %96 = vector.load %arg2[%c6, %c0_30] : memref<72x128xf32, #tpu.memory_space<vmem>>, vector<1x32xf32>
    %c7 = arith.constant 7 : index
    %c0_31 = arith.constant 0 : index
    %97 = vector.load %arg2[%c7, %c0_31] : memref<72x128xf32, #tpu.memory_space<vmem>>, vector<1x32xf32>
    %cst_32 = arith.constant dense<0.000000e+00> : vector<16xf32>
    %98 = vector.multi_reduction <add>, %95, %cst_32 [1] : vector<16x32xf32> to vector<16xf32>
    %99 = vector.shape_cast %98 : vector<16xf32> to vector<16x1xf32>
    %cst_33 = arith.constant 3.200000e+01 : f32
    %100 = vector.broadcast %cst_33 : f32 to vector<16x1xf32>
    %101 = arith.divf %99, %100 : vector<16x1xf32>
    %102 = vector.broadcast %101 : vector<16x1xf32> to vector<16x32xf32>
    %103 = arith.subf %95, %102 : vector<16x32xf32>
    %104 = arith.mulf %103, %103 : vector<16x32xf32>
    %cst_34 = arith.constant dense<0.000000e+00> : vector<16xf32>
    %105 = vector.multi_reduction <add>, %104, %cst_34 [1] : vector<16x32xf32> to vector<16xf32>
    %106 = vector.shape_cast %105 : vector<16xf32> to vector<16x1xf32>
    %cst_35 = arith.constant 3.200000e+01 : f32
    %107 = vector.broadcast %cst_35 : f32 to vector<16x1xf32>
    %108 = arith.divf %106, %107 : vector<16x1xf32>
    %109 = vector.broadcast %101 : vector<16x1xf32> to vector<16x32xf32>
    %110 = arith.subf %95, %109 : vector<16x32xf32>
    %cst_36 = arith.constant 9.99999996E-13 : f32
    %111 = vector.broadcast %cst_36 : f32 to vector<16x1xf32>
    %112 = arith.addf %108, %111 : vector<16x1xf32>
    %113 = math.rsqrt %112 : vector<16x1xf32>
    %114 = vector.broadcast %113 : vector<16x1xf32> to vector<16x32xf32>
    %115 = arith.mulf %110, %114 : vector<16x32xf32>
    %116 = vector.broadcast %96 : vector<1x32xf32> to vector<16x32xf32>
    %117 = arith.mulf %115, %116 : vector<16x32xf32>
    %118 = vector.broadcast %97 : vector<1x32xf32> to vector<16x32xf32>
    %119 = arith.addf %117, %118 : vector<16x32xf32>
    %c0_37 = arith.constant 0 : index
    %c0_38 = arith.constant 0 : index
    %120 = vector.load %arg3[%c0_37, %c0_38] : memref<16x32xf32, #tpu.memory_space<vmem>>, vector<16x32xf32>
    tpu.vector_store %arg3[%c0_37, %c0_38], %119 {strides = array<i32>} : memref<16x32xf32, #tpu.memory_space<vmem>>, vector<16x32xf32>,
    return
  }
}

</mosaic_0001>

<llo_original>
// kernel: tpu_custom_call.1
$region0: #{tpu_custom_call.1}
  #allocation0 [shape = 'u32[]', space=smem, size = 0x4, offset = 0x4, fixed_abs, tag = 'smem constant byte address 0x4 - core index']
  #allocation1 [shape = 'u32[144,128]{1,0:T(1,128)}', space=vmem, size = 0x12000, scoped, tag = 'internal scratch']
  %s0 = inlined_call_operand.hbm [shape: f32[16,32], index: 0, kind: input, shape index: {}]
  %s1 = inlined_call_operand.hbm [shape: bf16[32,256], index: 1, kind: input, shape index: {}]
  %s2 = inlined_call_operand.hbm [shape: f32[72,128], index: 2, kind: input, shape index: {}]
  %s3 = inlined_call_operand.hbm [shape: f32[16,32], index: 3, kind: output, shape index: {}]
  %s4 = sld [smem:[#allocation0]]
  $region34: #{tpu_custom_call.1} parent=0
    _
  %s6 = ssub.s32 1, %s4
  %s7 = scalar_select 0, %s6, %s4
  $region1: #{tpu_custom_call.1} parent=0
    #allocation2 [shape = 'u8[8192]{0}', space=vmem, size = 0x2000, scoped, tag = 'input window, operand 0, single buffered']
    #allocation3 [shape = 's32[1]{0}', space=sflag, size = 0x4, scoped, tag = 'scoped memory for tpu_custom_call.1']
    #allocation4 [shape = 's32[1]{0}', space=sflag, size = 0x4, scoped, tag = 'scoped memory for tpu_custom_call.1']
    #allocation5 [shape = 'u8[16384]{0}', space=vmem, size = 0x4000, scoped, tag = 'input window, operand 1, single buffered']
    #allocation6 [shape = 's32[1]{0}', space=sflag, size = 0x4, scoped, tag = 'scoped memory for tpu_custom_call.1']
    #allocation7 [shape = 'u8[36864]{0}', space=vmem, size = 0x9000, scoped, tag = 'input window, operand 2, single buffered']
    #allocation8 [shape = 'u8[8192]{0}', space=vmem, size = 0x2000, scoped, tag = 'output window, operand 0, single buffered']
    %8 = vsyncpa [#allocation3], 0
    %9 = vsyncpa [#allocation6], 0
    %10 = vsyncpa [#allocation4], 0
    // Predicated region
    $region2: #{tpu_custom_call.1} parent=1 // pred_check
      _
    $region3: #{tpu_custom_call.1} parent=1 // pred_check_branch
      %12 = sbr.rel (0) target = $region5
    $region4: #{tpu_custom_call.1} parent=1 // pred_region
      %s14 = ssub.s32 256, 256
      %15 = vsyncadd [#allocation3], %s14
      %s16 = sshll.u32 [#allocation2], 4
      %s17 = int_to_ptr.vmem [resolvable:$true] %s16
      %22 = dma.hbm_to_vmem [thread:$0]  %s0, 256, %s17, [#allocation3], 128, 128, 8
    $region5: #{tpu_custom_call.1} parent=1 // pred_fallthru
      _
    // Predicated region
    $region6: #{tpu_custom_call.1} parent=1 // pred_check
      _
    $region7: #{tpu_custom_call.1} parent=1 // pred_check_branch
      %24 = sbr.rel (0) target = $region9
    $region8: #{tpu_custom_call.1} parent=1 // pred_region
      %s26 = ssub.s32 512, 512
      %27 = vsyncadd [#allocation6], %s26
      %s28 = sshll.u32 [#allocation5], 4
      %s29 = int_to_ptr.vmem [resolvable:$true] %s28
      %34 = dma.hbm_to_vmem [thread:$0]  %s1, 512, %s29, [#allocation6], 128, 128, 8
    $region9: #{tpu_custom_call.1} parent=1 // pred_fallthru
      _
    // Predicated region
    $region10: #{tpu_custom_call.1} parent=1 // pred_check
      _
    $region11: #{tpu_custom_call.1} parent=1 // pred_check_branch
      %36 = sbr.rel (0) target = $region13
    $region12: #{tpu_custom_call.1} parent=1 // pred_region
      %s38 = ssub.s32 1152, 1152
      %39 = vsyncadd [#allocation6], %s38
      %s40 = sshll.u32 [#allocation7], 4
      %s41 = int_to_ptr.vmem [resolvable:$true] %s40
      %46 = dma.hbm_to_vmem [thread:$0]  %s2, 1152, %s41, [#allocation6], 128, 128, 8
    $region13: #{tpu_custom_call.1} parent=1 // pred_fallthru
      _
    // Predicated region
    $region14: #{tpu_custom_call.1} parent=1 // pred_check
      _
    $region15: #{tpu_custom_call.1} parent=1 // pred_check_branch
      %48 = sbr.rel (0) target = $region17
    $region16: #{tpu_custom_call.1} parent=1 // pred_region
      %49 = dma.done [#allocation3], 256
    $region17: #{tpu_custom_call.1} parent=1 // pred_fallthru
      _
    // Predicated region
    $region18: #{tpu_custom_call.1} parent=1 // pred_check
      _
    $region19: #{tpu_custom_call.1} parent=1 // pred_check_branch
      %51 = sbr.rel (0) target = $region21
    $region20: #{tpu_custom_call.1} parent=1 // pred_region
      %52 = dma.done [#allocation6], 512
    $region21: #{tpu_custom_call.1} parent=1 // pred_fallthru
      _
    // Predicated region
    $region22: #{tpu_custom_call.1} parent=1 // pred_check
      _
    $region23: #{tpu_custom_call.1} parent=1 // pred_check_branch
      %54 = sbr.rel (0) target = $region25
    $region24: #{tpu_custom_call.1} parent=1 // pred_region
      %55 = dma.done [#allocation6], 1152
    $region25: #{tpu_custom_call.1} parent=1 // pred_fallthru
      _
    %v57 = vld [vmem:[#allocation2] sm:$0xff]
    %v58 = vld [vmem:[#allocation2 + $0x8] sm:$0xff]
    %v59 = vpack.c.bf16 %v58, %v57
    %v60 = vld [vmem:[#allocation5] sm:$0xf]
    %v61 = vld [vmem:[#allocation5 + $0x8] sm:$0xf]
    %v62 = vld [vmem:[#allocation5 + $0x10] sm:$0xf]
    %v63 = vld [vmem:[#allocation5 + $0x18] sm:$0xf]
    %v64 = vld [vmem:[#allocation7] sm:$0x1]
    %v65 = vlaneseq
    %v66 = vshrl.u32 %v65, 7
    %v67 = vsub.s32 0, %v66
    %v68 = vrot.slane %v64, %v67
    %v73 = vunpack.c.l.b16 %v60
    %v74 = vunpack.c.l.b16 %v61
    %v75 = vunpack.c.l.b16 %v62
    %v76 = vunpack.c.l.b16 %v63
    %v77 = vpack.c.b16 %v74, %v73
    %v78 = vpack.c.b16 %v76, %v75
    %vm81 = vcmask 261120
    %v83 = vsel %vm81, %v59, 0
    %85 = vmatprep.subr.bf16.mxu0 0
    %86 = vmatpush1.bf16.msra.mxu0 0
    %87 = vmatprep.subr.bf16.mxu0 0
    %88 = vmatpush1.bf16.msra.mxu0 0
    %89 = vmatprep.subr.bf16.mxu0 0
    %90 = vmatpush1.bf16.msra.mxu0 0
    %91 = vmatprep.subr.bf16.mxu0 0
    %92 = vmatpush1.bf16.msra.mxu0 0
    %93 = vmatprep.subr.bf16.mxu0 0
    %94 = vmatpush1.bf16.msra.mxu0 0
    %95 = vmatprep.subr.bf16.mxu0 0
    %96 = vmatpush1.bf16.msra.mxu0 0
    %97 = vmatprep.subr.bf16.mxu0 0
    %98 = vmatpush1.bf16.msra.mxu0 %v78
    %99 = vmatprep.subr.bf16.mxu0 0
    %100 = vmatpush1.bf16.msra.mxu0 %v77
    %101 = vmatprep.subr.bf16.mxu0 0
    %102 = vmatpush2.bf16.msra.mxu0 0
    %103 = vmatprep.subr.bf16.mxu0 0
    %104 = vmatpush2.bf16.msra.mxu0 0
    %105 = vmatprep.subr.bf16.mxu0 0
    %106 = vmatpush2.bf16.msra.mxu0 0
    %107 = vmatprep.subr.bf16.mxu0 0
    %108 = vmatpush2.bf16.msra.mxu0 0
    %109 = vmatprep.subr.bf16.mxu0 0
    %110 = vmatpush2.bf16.msra.mxu0 0
    %111 = vmatprep.subr.bf16.mxu0 0
    %112 = vmatpush2.bf16.msra.mxu0 0
    %113 = vmatprep.subr.bf16.mxu0 0
    %114 = vmatpush2.bf16.msra.mxu0 0
    %115 = vmatprep.subr.bf16.mxu0 0
    %116 = vmatpush2.bf16.msra.mxu0 0
    %117 = vmatprep.mubr.bf16.mxu0 0
    %118 = vmatmul.mubr.bf16.gmra.mxu0 %v83
    %v119 = vpop.f32.mrf.mxu0
    %v120 = vadd.f32 %v68, %v119
    %v121 = vpop.f32.mrf.mxu0
    %v122 = vpop.f32.mrf.mxu0
    %v123 = vadd.f32 %v68, %v122
    %v124 = vpop.f32.mrf.mxu0
    %125 = vdwg.mxu0
    %v126 = vpack.c.bf16 %v123, %v120
    %128 = vrot.lane.b32.xlu0 %v126, 120
    %v129 = vpop.permute.xlu0 %128
    %130 = vrot.lane.b32.xlu0 %v126, 112
    %v131 = vpop.permute.xlu0 %130
    %132 = vrot.lane.b32.xlu0 %v126, 104
    %v133 = vpop.permute.xlu0 %132
    %134 = vrot.lane.b32.xlu0 %v126, 96
    %v135 = vpop.permute.xlu0 %134
    %136 = vrot.lane.b32.xlu0 %v129, 96
    %v137 = vpop.permute.xlu0 %136
    %138 = vrot.lane.b32.xlu0 %v131, 96
    %v139 = vpop.permute.xlu0 %138
    %140 = vrot.lane.b32.xlu0 %v133, 96
    %v141 = vpop.permute.xlu0 %140
    %vm142 = vcmask 64512
    %v144 = vsel %vm142, %v126, 0
    %v147 = vsel %vm142, %v129, 0
    %v150 = vsel %vm142, %v131, 0
    %v153 = vsel %vm142, %v133, 0
    %v156 = vsel %vm142, %v135, 0
    %v159 = vsel %vm142, %v137, 0
    %v162 = vsel %vm142, %v139, 0
    %v165 = vsel %vm142, %v141, 0
    %167 = vmatprep.subr.bf16.mxu0 0
    %168 = vmatpush1.bf16.xpose.msra.mxu0 0
    %169 = vmatprep.subr.bf16.mxu0 0
    %170 = vmatpush1.bf16.xpose.msra.mxu0 0
    %171 = vmatprep.subr.bf16.mxu0 0
    %172 = vmatpush1.bf16.xpose.msra.mxu0 0
    %173 = vmatprep.subr.bf16.mxu0 0
    %174 = vmatpush1.bf16.xpose.msra.mxu0 0
    %175 = vmatprep.subr.bf16.mxu0 0
    %176 = vmatpush1.bf16.xpose.msra.mxu0 %v165
    %177 = vmatprep.subr.bf16.mxu0 0
    %178 = vmatpush1.bf16.xpose.msra.mxu0 %v162
    %179 = vmatprep.subr.bf16.mxu0 0
    %180 = vmatpush1.bf16.xpose.msra.mxu0 %v159
    %181 = vmatprep.subr.bf16.mxu0 0
    %182 = vmatpush1.bf16.xpose.msra.mxu0 %v156
    %183 = vmatprep.subr.bf16.mxu0 0
    %184 = vmatpush2.bf16.xpose.msra.mxu0 0
    %185 = vmatprep.subr.bf16.mxu0 0
    %186 = vmatpush2.bf16.xpose.msra.mxu0 0
    %187 = vmatprep.subr.bf16.mxu0 0
    %188 = vmatpush2.bf16.xpose.msra.mxu0 0
    %189 = vmatprep.subr.bf16.mxu0 0
    %190 = vmatpush2.bf16.xpose.msra.mxu0 0
    %191 = vmatprep.subr.bf16.mxu0 0
    %192 = vmatpush2.bf16.xpose.msra.mxu0 0
    %193 = vmatprep.subr.bf16.mxu0 0
    %194 = vmatpush2.bf16.xpose.msra.mxu0 0
    %195 = vmatprep.subr.bf16.mxu0 0
    %196 = vmatpush2.bf16.xpose.msra.mxu0 0
    %197 = vmatprep.subr.bf16.mxu0 0
    %198 = vmatpush2.bf16.xpose.msra.mxu0 0
    %199 = vmatprep.mubr.bf16.mxu0 0
    %200 = vmatmul.mubr.bf16.gmra.mxu0 %v144
    %v201 = vpop.f32.mrf.mxu0
    %v202 = vadd.f32 0.0, %v201
    %v203 = vpop.f32.mrf.mxu0
    %v204 = vpop.f32.mrf.mxu0
    %v205 = vadd.f32 0.0, %v204
    %v206 = vpop.f32.mrf.mxu0
    %207 = vmatprep.mubr.bf16.mxu0 0
    %208 = vmatmul.mubr.bf16.gmra.mxu0 %v147
    %v209 = vpop.f32.mrf.mxu0
    %v210 = vadd.f32 0.0, %v209
    %v211 = vpop.f32.mrf.mxu0
    %v212 = vpop.f32.mrf.mxu0
    %v213 = vadd.f32 0.0, %v212
    %v214 = vpop.f32.mrf.mxu0
    %215 = vmatprep.mubr.bf16.mxu0 0
    %216 = vmatmul.mubr.bf16.gmra.mxu0 %v150
    %v217 = vpop.f32.mrf.mxu0
    %v218 = vadd.f32 0.0, %v217
    %v219 = vpop.f32.mrf.mxu0
    %v220 = vpop.f32.mrf.mxu0
    %v221 = vadd.f32 0.0, %v220
    %v222 = vpop.f32.mrf.mxu0
    %223 = vmatprep.mubr.bf16.mxu0 0
    %224 = vmatmul.mubr.bf16.gmra.mxu0 %v153
    %v225 = vpop.f32.mrf.mxu0
    %v226 = vadd.f32 0.0, %v225
    %v227 = vpop.f32.mrf.mxu0
    %v228 = vpop.f32.mrf.mxu0
    %v229 = vadd.f32 0.0, %v228
    %v230 = vpop.f32.mrf.mxu0
    %231 = vdwg.mxu0
    %v232 = vmul.f32 %v202, 0.35355338
    %v233 = vmul.f32 %v205, 0.35355338
    %v234 = vmul.f32 %v210, 0.35355338
    %v235 = vmul.f32 %v213, 0.35355338
    %v236 = vmul.f32 %v218, 0.35355338
    %v237 = vmul.f32 %v221, 0.35355338
    %v238 = vmul.f32 %v226, 0.35355338
    %v239 = vmul.f32 %v229, 0.35355338
    %v240 = vld [vmem:[#allocation7 + $0x8] sm:$0xff]
    %v241 = vld [vmem:[#allocation7 + $0x10] sm:$0xff]
    %v242 = vld [vmem:[#allocation7 + $0x18] sm:$0xff]
    %v243 = vld [vmem:[#allocation7 + $0x20] sm:$0xff]
    %v244 = vld [vmem:[#allocation7 + $0x28] sm:$0xff]
    %v245 = vld [vmem:[#allocation7 + $0x30] sm:$0xff]
    %v246 = vld [vmem:[#allocation7 + $0x38] sm:$0xff]
    %v247 = vld [vmem:[#allocation7 + $0x40] sm:$0xff]
    %v248 = vadd.f32 %v232, %v240
    %v249 = vadd.f32 %v233, %v241
    %v250 = vadd.f32 %v234, %v242
    %v251 = vadd.f32 %v235, %v243
    %v252 = vadd.f32 %v236, %v244
    %v253 = vadd.f32 %v237, %v245
    %v254 = vadd.f32 %v238, %v246
    %v255 = vadd.f32 %v239, %v247
    %vm256 = vcmask 523264
    %v257 = vsel %vm256, %v248, -inf
    %258 = vmax.xlane.f32.xlu0 %v257
    %v259 = vpop.xlane.xlu0 %258
    %v260 = vsel %vm256, %v249, -inf
    %261 = vmax.xlane.f32.xlu0 %v260
    %v262 = vpop.xlane.xlu0 %261
    %v263 = vsel %vm256, %v250, -inf
    %264 = vmax.xlane.f32.xlu0 %v263
    %v265 = vpop.xlane.xlu0 %264
    %v266 = vsel %vm256, %v251, -inf
    %267 = vmax.xlane.f32.xlu0 %v266
    %v268 = vpop.xlane.xlu0 %267
    %v269 = vsel %vm256, %v252, -inf
    %270 = vmax.xlane.f32.xlu0 %v269
    %v271 = vpop.xlane.xlu0 %270
    %v272 = vsel %vm256, %v253, -inf
    %273 = vmax.xlane.f32.xlu0 %v272
    %v274 = vpop.xlane.xlu0 %273
    %v275 = vsel %vm256, %v254, -inf
    %276 = vmax.xlane.f32.xlu0 %v275
    %v277 = vpop.xlane.xlu0 %276
    %v278 = vsel %vm256, %v255, -inf
    %279 = vmax.xlane.f32.xlu0 %v278
    %v280 = vpop.xlane.xlu0 %279
    %v281 = vsub.f32 %v248, %v259
    %v282 = vsub.f32 %v249, %v262
    %v283 = vsub.f32 %v250, %v265
    %v284 = vsub.f32 %v251, %v268
    %v285 = vsub.f32 %v252, %v271
    %v286 = vsub.f32 %v253, %v274
    %v287 = vsub.f32 %v254, %v277
    %v288 = vsub.f32 %v255, %v280
    %v289 = vmul.f32 %v281, 1.442695
    %v290 = vpow.pop %v289
    %v291 = vmul.f32 %v282, 1.442695
    %v292 = vpow.pop %v291
    %v293 = vmul.f32 %v283, 1.442695
    %v294 = vpow.pop %v293
    %v295 = vmul.f32 %v284, 1.442695
    %v296 = vpow.pop %v295
    %v297 = vmul.f32 %v285, 1.442695
    %v298 = vpow.pop %v297
    %v299 = vmul.f32 %v286, 1.442695
    %v300 = vpow.pop %v299
    %v301 = vmul.f32 %v287, 1.442695
    %v302 = vpow.pop %v301
    %v303 = vmul.f32 %v288, 1.442695
    %v304 = vpow.pop %v303
    %v305 = vsel %vm256, %v290, 0.0
    %306 = vadd.xlane.f32.xlu0 %v305
    %v307 = vpop.xlane.xlu0 %306
    %v308 = vsel %vm256, %v292, 0.0
    %309 = vadd.xlane.f32.xlu0 %v308
    %v310 = vpop.xlane.xlu0 %309
    %v311 = vsel %vm256, %v294, 0.0
    %312 = vadd.xlane.f32.xlu0 %v311
    %v313 = vpop.xlane.xlu0 %312
    %v314 = vsel %vm256, %v296, 0.0
    %315 = vadd.xlane.f32.xlu0 %v314
    %v316 = vpop.xlane.xlu0 %315
    %v317 = vsel %vm256, %v298, 0.0
    %318 = vadd.xlane.f32.xlu0 %v317
    %v319 = vpop.xlane.xlu0 %318
    %v320 = vsel %vm256, %v300, 0.0
    %321 = vadd.xlane.f32.xlu0 %v320
    %v322 = vpop.xlane.xlu0 %321
    %v323 = vsel %vm256, %v302, 0.0
    %324 = vadd.xlane.f32.xlu0 %v323
    %v325 = vpop.xlane.xlu0 %324
    %v326 = vsel %vm256, %v304, 0.0
    %327 = vadd.xlane.f32.xlu0 %v326
    %v328 = vpop.xlane.xlu0 %327
    %v329 = vrcp.pop %v307
    %v330 = vmul.f32 %v290, %v329
    %v331 = vrcp.pop %v310
    %v332 = vmul.f32 %v292, %v331
    %v333 = vrcp.pop %v313
    %v334 = vmul.f32 %v294, %v333
    %v335 = vrcp.pop %v316
    %v336 = vmul.f32 %v296, %v335
    %v337 = vrcp.pop %v319
    %v338 = vmul.f32 %v298, %v337
    %v339 = vrcp.pop %v322
    %v340 = vmul.f32 %v300, %v339
    %v341 = vrcp.pop %v325
    %v342 = vmul.f32 %v302, %v341
    %v343 = vrcp.pop %v328
    %v344 = vmul.f32 %v304, %v343
    %v345 = vpack.c.bf16 %v332, %v330
    %v346 = vpack.c.bf16 %v336, %v334
    %v347 = vpack.c.bf16 %v340, %v338
    %v348 = vpack.c.bf16 %v344, %v342
    %349 = vrot.lane.b32.xlu0 %v126, 64
    %v350 = vpop.permute.xlu0 %349
    %351 = vrot.lane.b32.xlu0 %v129, 64
    %v352 = vpop.permute.xlu0 %351
    %353 = vrot.lane.b32.xlu0 %v131, 64
    %v354 = vpop.permute.xlu0 %353
    %355 = vrot.lane.b32.xlu0 %v133, 64
    %v356 = vpop.permute.xlu0 %355
    %v362 = vsel %vm256, %v345, 0
    %v365 = vsel %vm256, %v346, 0
    %v368 = vsel %vm256, %v347, 0
    %v371 = vsel %vm256, %v348, 0
    %373 = vmatprep.subr.bf16.mxu0 0
    %374 = vmatpush1.bf16.msra.mxu0 0
    %375 = vmatprep.subr.bf16.mxu0 0
    %376 = vmatpush1.bf16.msra.mxu0 0
    %377 = vmatprep.subr.bf16.mxu0 0
    %378 = vmatpush1.bf16.msra.mxu0 0
    %379 = vmatprep.subr.bf16.mxu0 0
    %380 = vmatpush1.bf16.msra.mxu0 0
    %381 = vmatprep.subr.bf16.mxu0 0
    %382 = vmatpush1.bf16.msra.mxu0 %v356
    %383 = vmatprep.subr.bf16.mxu0 0
    %384 = vmatpush1.bf16.msra.mxu0 %v354
    %385 = vmatprep.subr.bf16.mxu0 0
    %386 = vmatpush1.bf16.msra.mxu0 %v352
    %387 = vmatprep.subr.bf16.mxu0 0
    %388 = vmatpush1.bf16.msra.mxu0 %v350
    %389 = vmatprep.subr.bf16.mxu0 0
    %390 = vmatpush2.bf16.msra.mxu0 0
    %391 = vmatprep.subr.bf16.mxu0 0
    %392 = vmatpush2.bf16.msra.mxu0 0
    %393 = vmatprep.subr.bf16.mxu0 0
    %394 = vmatpush2.bf16.msra.mxu0 0
    %395 = vmatprep.subr.bf16.mxu0 0
    %396 = vmatpush2.bf16.msra.mxu0 0
    %397 = vmatprep.subr.bf16.mxu0 0
    %398 = vmatpush2.bf16.msra.mxu0 0
    %399 = vmatprep.subr.bf16.mxu0 0
    %400 = vmatpush2.bf16.msra.mxu0 0
    %401 = vmatprep.subr.bf16.mxu0 0
    %402 = vmatpush2.bf16.msra.mxu0 0
    %403 = vmatprep.subr.bf16.mxu0 0
    %404 = vmatpush2.bf16.msra.mxu0 0
    %405 = vmatprep.mubr.bf16.mxu0 0
    %406 = vmatmul.mubr.bf16.gmra.mxu0 %v362
    %v407 = vpop.f32.mrf.mxu0
    %v408 = vadd.f32 0.0, %v407
    %v409 = vpop.f32.mrf.mxu0
    %v410 = vpop.f32.mrf.mxu0
    %v411 = vadd.f32 0.0, %v410
    %v412 = vpop.f32.mrf.mxu0
    %413 = vmatprep.mubr.bf16.mxu0 0
    %414 = vmatmul.mubr.bf16.gmra.mxu0 %v365
    %v415 = vpop.f32.mrf.mxu0
    %v416 = vadd.f32 0.0, %v415
    %v417 = vpop.f32.mrf.mxu0
    %v418 = vpop.f32.mrf.mxu0
    %v419 = vadd.f32 0.0, %v418
    %v420 = vpop.f32.mrf.mxu0
    %421 = vmatprep.mubr.bf16.mxu0 0
    %422 = vmatmul.mubr.bf16.gmra.mxu0 %v368
    %v423 = vpop.f32.mrf.mxu0
    %v424 = vadd.f32 0.0, %v423
    %v425 = vpop.f32.mrf.mxu0
    %v426 = vpop.f32.mrf.mxu0
    %v427 = vadd.f32 0.0, %v426
    %v428 = vpop.f32.mrf.mxu0
    %429 = vmatprep.mubr.bf16.mxu0 0
    %430 = vmatmul.mubr.bf16.gmra.mxu0 %v371
    %v431 = vpop.f32.mrf.mxu0
    %v432 = vadd.f32 0.0, %v431
    %v433 = vpop.f32.mrf.mxu0
    %v434 = vpop.f32.mrf.mxu0
    %v435 = vadd.f32 0.0, %v434
    %v436 = vpop.f32.mrf.mxu0
    %437 = vdwg.mxu0
    %440 = vrot.lane.b32.xlu0 %v416, 8
    %v441 = vpop.permute.xlu0 %440
    %442 = vrot.lane.b32.xlu0 %v419, 8
    %v443 = vpop.permute.xlu0 %442
    %448 = vrot.lane.b32.xlu0 %v424, 16
    %v449 = vpop.permute.xlu0 %448
    %450 = vrot.lane.b32.xlu0 %v427, 16
    %v451 = vpop.permute.xlu0 %450
    %456 = vrot.lane.b32.xlu0 %v432, 24
    %v457 = vpop.permute.xlu0 %456
    %458 = vrot.lane.b32.xlu0 %v435, 24
    %v459 = vpop.permute.xlu0 %458
    %v462 = vsel %vm142, %v408, %v441
    %v463 = vsel %vm142, %v411, %v443
    %vm464 = vcmask 130048
    %v465 = vsel %vm464, %v462, %v449
    %v466 = vsel %vm464, %v463, %v451
    %vm467 = vcmask 195584
    %v468 = vsel %vm467, %v465, %v457
    %v469 = vsel %vm467, %v466, %v459
    %v470 = vpack.c.bf16 %v469, %v468
    %v471 = vld [vmem:[#allocation7 + $0x1] sm:$0x1]
    %v472 = vlaneseq
    %v473 = vshrl.u32 %v472, 7
    %v474 = vsub.s32 0, %v473
    %v475 = vrot.slane %v471, %v474
    %476 = vrot.lane.b32.xlu0 %v77, 32
    %v477 = vpop.permute.xlu0 %476
    %478 = vrot.lane.b32.xlu0 %v78, 32
    %v479 = vpop.permute.xlu0 %478
    %v483 = vsel %vm81, %v470, 0
    %485 = vmatprep.subr.bf16.mxu0 0
    %486 = vmatpush1.bf16.msra.mxu0 0
    %487 = vmatprep.subr.bf16.mxu0 0
    %488 = vmatpush1.bf16.msra.mxu0 0
    %489 = vmatprep.subr.bf16.mxu0 0
    %490 = vmatpush1.bf16.msra.mxu0 0
    %491 = vmatprep.subr.bf16.mxu0 0
    %492 = vmatpush1.bf16.msra.mxu0 0
    %493 = vmatprep.subr.bf16.mxu0 0
    %494 = vmatpush1.bf16.msra.mxu0 0
    %495 = vmatprep.subr.bf16.mxu0 0
    %496 = vmatpush1.bf16.msra.mxu0 0
    %497 = vmatprep.subr.bf16.mxu0 0
    %498 = vmatpush1.bf16.msra.mxu0 %v479
    %499 = vmatprep.subr.bf16.mxu0 0
    %500 = vmatpush1.bf16.msra.mxu0 %v477
    %501 = vmatprep.subr.bf16.mxu0 0
    %502 = vmatpush2.bf16.msra.mxu0 0
    %503 = vmatprep.subr.bf16.mxu0 0
    %504 = vmatpush2.bf16.msra.mxu0 0
    %505 = vmatprep.subr.bf16.mxu0 0
    %506 = vmatpush2.bf16.msra.mxu0 0
    %507 = vmatprep.subr.bf16.mxu0 0
    %508 = vmatpush2.bf16.msra.mxu0 0
    %509 = vmatprep.subr.bf16.mxu0 0
    %510 = vmatpush2.bf16.msra.mxu0 0
    %511 = vmatprep.subr.bf16.mxu0 0
    %512 = vmatpush2.bf16.msra.mxu0 0
    %513 = vmatprep.subr.bf16.mxu0 0
    %514 = vmatpush2.bf16.msra.mxu0 0
    %515 = vmatprep.subr.bf16.mxu0 0
    %516 = vmatpush2.bf16.msra.mxu0 0
    %517 = vmatprep.mubr.bf16.mxu0 0
    %518 = vmatmul.mubr.bf16.gmra.mxu0 %v483
    %v519 = vpop.f32.mrf.mxu0
    %v520 = vadd.f32 %v475, %v519
    %v521 = vpop.f32.mrf.mxu0
    %v522 = vpop.f32.mrf.mxu0
    %v523 = vadd.f32 %v475, %v522
    %v524 = vpop.f32.mrf.mxu0
    %525 = vdwg.mxu0
    %v526 = vadd.f32 %v520, %v57
    %v527 = vadd.f32 %v523, %v58
    %v528 = vld [vmem:[#allocation7 + $0x2] sm:$0x1]
    %v529 = vld [vmem:[#allocation7 + $0x3] sm:$0x1]
    %v530 = vsel %vm81, %v526, 0.0
    %531 = vadd.xlane.f32.xlu0 %v530
    %v532 = vpop.xlane.xlu0 %531
    %v533 = vsel %vm81, %v527, 0.0
    %534 = vadd.xlane.f32.xlu0 %v533
    %v535 = vpop.xlane.xlu0 %534
    %v536 = vrcp.pop 32.0
    %v537 = vmul.f32 %v532, %v536
    %v538 = vmul.f32 %v535, %v536
    %v539 = vsub.f32 %v526, %v537
    %v540 = vsub.f32 %v527, %v538
    %v541 = vmul.f32 %v539, %v539
    %v542 = vmul.f32 %v540, %v540
    %v543 = vsel %vm81, %v541, 0.0
    %544 = vadd.xlane.f32.xlu0 %v543
    %v545 = vpop.xlane.xlu0 %544
    %v546 = vsel %vm81, %v542, 0.0
    %547 = vadd.xlane.f32.xlu0 %v546
    %v548 = vpop.xlane.xlu0 %547
    %v549 = vmul.f32 %v545, %v536
    %v550 = vmul.f32 %v548, %v536
    %v551 = vadd.f32 %v549, 1e-12
    %v552 = vadd.f32 %v550, 1e-12
    %v553 = vrsqrt.pop %v551
    %v554 = vrsqrt.pop %v552
    %v555 = vmul.f32 %v539, %v553
    %v556 = vmul.f32 %v540, %v554
    %v557 = vlaneseq
    %v558 = vshrl.u32 %v557, 7
    %v559 = vsub.s32 0, %v558
    %v560 = vrot.slane %v528, %v559
    %v561 = vmul.f32 %v555, %v560
    %v562 = vmul.f32 %v556, %v560
    %v563 = vlaneseq
    %v564 = vshrl.u32 %v563, 7
    %v565 = vsub.s32 0, %v564
    %v566 = vrot.slane %v529, %v565
    %v567 = vadd.f32 %v561, %v566
    %v568 = vadd.f32 %v562, %v566
    %v569 = vpack.c.bf16 %v568, %v567
    %v570 = vld [vmem:[#allocation5 + $0x4] sm:$0xf]
    %v571 = vld [vmem:[#allocation5 + $0xc] sm:$0xf]
    %v572 = vld [vmem:[#allocation5 + $0x14] sm:$0xf]
    %v573 = vld [vmem:[#allocation5 + $0x1c] sm:$0xf]
    %v574 = vld [vmem:[#allocation7 + $0x4] sm:$0x1]
    %v575 = vlaneseq
    %v576 = vshrl.u32 %v575, 7
    %v577 = vsub.s32 0, %v576
    %v578 = vrot.slane %v574, %v577
    %v583 = vunpack.c.l.b16 %v570
    %v584 = vunpack.c.l.b16 %v571
    %v585 = vunpack.c.l.b16 %v572
    %v586 = vunpack.c.l.b16 %v573
    %v587 = vpack.c.b16 %v584, %v583
    %v588 = vpack.c.b16 %v586, %v585
    %v592 = vsel %vm81, %v569, 0
    %594 = vmatprep.subr.bf16.mxu0 0
    %595 = vmatpush1.bf16.msra.mxu0 0
    %596 = vmatprep.subr.bf16.mxu0 0
    %597 = vmatpush1.bf16.msra.mxu0 0
    %598 = vmatprep.subr.bf16.mxu0 0
    %599 = vmatpush1.bf16.msra.mxu0 0
    %600 = vmatprep.subr.bf16.mxu0 0
    %601 = vmatpush1.bf16.msra.mxu0 0
    %602 = vmatprep.subr.bf16.mxu0 0
    %603 = vmatpush1.bf16.msra.mxu0 0
    %604 = vmatprep.subr.bf16.mxu0 0
    %605 = vmatpush1.bf16.msra.mxu0 0
    %606 = vmatprep.subr.bf16.mxu0 0
    %607 = vmatpush1.bf16.msra.mxu0 %v588
    %608 = vmatprep.subr.bf16.mxu0 0
    %609 = vmatpush1.bf16.msra.mxu0 %v587
    %610 = vmatprep.subr.bf16.mxu0 0
    %611 = vmatpush2.bf16.msra.mxu0 0
    %612 = vmatprep.subr.bf16.mxu0 0
    %613 = vmatpush2.bf16.msra.mxu0 0
    %614 = vmatprep.subr.bf16.mxu0 0
    %615 = vmatpush2.bf16.msra.mxu0 0
    %616 = vmatprep.subr.bf16.mxu0 0
    %617 = vmatpush2.bf16.msra.mxu0 0
    %618 = vmatprep.subr.bf16.mxu0 0
    %619 = vmatpush2.bf16.msra.mxu0 0
    %620 = vmatprep.subr.bf16.mxu0 0
    %621 = vmatpush2.bf16.msra.mxu0 0
    %622 = vmatprep.subr.bf16.mxu0 0
    %623 = vmatpush2.bf16.msra.mxu0 0
    %624 = vmatprep.subr.bf16.mxu0 0
    %625 = vmatpush2.bf16.msra.mxu0 0
    %626 = vmatprep.mubr.bf16.mxu0 0
    %627 = vmatmul.mubr.bf16.gmra.mxu0 %v592
    %v628 = vpop.f32.mrf.mxu0
    %v629 = vadd.f32 %v578, %v628
    %v630 = vpop.f32.mrf.mxu0
    %v631 = vpop.f32.mrf.mxu0
    %v632 = vadd.f32 %v578, %v631
    %v633 = vpop.f32.mrf.mxu0
    %634 = vdwg.mxu0
    %v635 = vmul.f32 %v629, 0.5
    %v636 = vmul.f32 %v632, 0.5
    %v637 = vmul.f32 %v629, 0.70710677
    %v638 = vmul.f32 %v632, 0.70710677
    %v639 = verf.f32.pop %v637
    %v640 = verf.f32.pop %v638
    %v641 = vadd.f32 %v639, 1.0
    %v642 = vadd.f32 %v640, 1.0
    %v643 = vmul.f32 %v635, %v641
    %v644 = vmul.f32 %v636, %v642
    %v645 = vpack.c.bf16 %v644, %v643
    %v646 = vld [vmem:[#allocation7 + $0x5] sm:$0x1]
    %v647 = vlaneseq
    %v648 = vshrl.u32 %v647, 7
    %v649 = vsub.s32 0, %v648
    %v650 = vrot.slane %v646, %v649
    %651 = vrot.lane.b32.xlu0 %v587, 64
    %v652 = vpop.permute.xlu0 %651
    %653 = vrot.lane.b32.xlu0 %v588, 64
    %v654 = vpop.permute.xlu0 %653
    %v656 = vsel %vm256, %v645, 0
    %v659 = vsel %vm256, %v652, 0
    %v662 = vsel %vm256, %v654, 0
    %664 = vmatprep.subr.bf16.mxu0 0
    %665 = vmatpush1.bf16.xpose.msra.mxu0 0
    %666 = vmatprep.subr.bf16.mxu0 0
    %667 = vmatpush1.bf16.xpose.msra.mxu0 0
    %668 = vmatprep.subr.bf16.mxu0 0
    %669 = vmatpush1.bf16.xpose.msra.mxu0 0
    %670 = vmatprep.subr.bf16.mxu0 0
    %671 = vmatpush1.bf16.xpose.msra.mxu0 0
    %672 = vmatprep.subr.bf16.mxu0 0
    %673 = vmatpush1.bf16.xpose.msra.mxu0 0
    %674 = vmatprep.subr.bf16.mxu0 0
    %675 = vmatpush1.bf16.xpose.msra.mxu0 0
    %676 = vmatprep.subr.bf16.mxu0 0
    %677 = vmatpush1.bf16.xpose.msra.mxu0 %v662
    %678 = vmatprep.subr.bf16.mxu0 0
    %679 = vmatpush1.bf16.xpose.msra.mxu0 %v659
    %680 = vmatprep.subr.bf16.mxu0 0
    %681 = vmatpush2.bf16.xpose.msra.mxu0 0
    %682 = vmatprep.subr.bf16.mxu0 0
    %683 = vmatpush2.bf16.xpose.msra.mxu0 0
    %684 = vmatprep.subr.bf16.mxu0 0
    %685 = vmatpush2.bf16.xpose.msra.mxu0 0
    %686 = vmatprep.subr.bf16.mxu0 0
    %687 = vmatpush2.bf16.xpose.msra.mxu0 0
    %688 = vmatprep.subr.bf16.mxu0 0
    %689 = vmatpush2.bf16.xpose.msra.mxu0 0
    %690 = vmatprep.subr.bf16.mxu0 0
    %691 = vmatpush2.bf16.xpose.msra.mxu0 0
    %692 = vmatprep.subr.bf16.mxu0 0
    %693 = vmatpush2.bf16.xpose.msra.mxu0 0
    %694 = vmatprep.subr.bf16.mxu0 0
    %695 = vmatpush2.bf16.xpose.msra.mxu0 0
    %696 = vmatprep.mubr.bf16.mxu0 0
    %697 = vmatmul.mubr.bf16.gmra.mxu0 %v656
    %v698 = vpop.f32.mrf.mxu0
    %v699 = vadd.f32 %v650, %v698
    %v700 = vpop.f32.mrf.mxu0
    %v701 = vpop.f32.mrf.mxu0
    %v702 = vadd.f32 %v650, %v701
    %v703 = vpop.f32.mrf.mxu0
    %704 = vdwg.mxu0
    %v705 = vadd.f32 %v699, %v567
    %v706 = vadd.f32 %v702, %v568
    %v707 = vld [vmem:[#allocation7 + $0x6] sm:$0x1]
    %v708 = vld [vmem:[#allocation7 + $0x7] sm:$0x1]
    %v709 = vsel %vm81, %v705, 0.0
    %710 = vadd.xlane.f32.xlu0 %v709
    %v711 = vpop.xlane.xlu0 %710
    %v712 = vsel %vm81, %v706, 0.0
    %713 = vadd.xlane.f32.xlu0 %v712
    %v714 = vpop.xlane.xlu0 %713
    %v715 = vmul.f32 %v711, %v536
    %v716 = vmul.f32 %v714, %v536
    %v717 = vsub.f32 %v705, %v715
    %v718 = vsub.f32 %v706, %v716
    %v719 = vmul.f32 %v717, %v717
    %v720 = vmul.f32 %v718, %v718
    %v721 = vsel %vm81, %v719, 0.0
    %722 = vadd.xlane.f32.xlu0 %v721
    %v723 = vpop.xlane.xlu0 %722
    %v724 = vsel %vm81, %v720, 0.0
    %725 = vadd.xlane.f32.xlu0 %v724
    %v726 = vpop.xlane.xlu0 %725
    %v727 = vmul.f32 %v723, %v536
    %v728 = vmul.f32 %v726, %v536
    %v729 = vadd.f32 %v727, 1e-12
    %v730 = vadd.f32 %v728, 1e-12
    %v731 = vrsqrt.pop %v729
    %v732 = vrsqrt.pop %v730
    %v733 = vmul.f32 %v717, %v731
    %v734 = vmul.f32 %v718, %v732
    %v735 = vlaneseq
    %v736 = vshrl.u32 %v735, 7
    %v737 = vsub.s32 0, %v736
    %v738 = vrot.slane %v707, %v737
    %v739 = vmul.f32 %v733, %v738
    %v740 = vmul.f32 %v734, %v738
    %v741 = vlaneseq
    %v742 = vshrl.u32 %v741, 7
    %v743 = vsub.s32 0, %v742
    %v744 = vrot.slane %v708, %v743
    %v745 = vadd.f32 %v739, %v744
    %v746 = vadd.f32 %v740, %v744
    %747 = vst.msk [vmem:[#allocation8] sm:$0xff] %vm81, %v745
    %748 = vst.msk [vmem:[#allocation8 + $0x8] sm:$0xff] %vm81, %v746
    // Predicated region
    $region26: #{tpu_custom_call.1} parent=1 // pred_check
      _
    $region27: #{tpu_custom_call.1} parent=1 // pred_check_branch
      %750 = sbr.rel (0) target = $region29
    $region28: #{tpu_custom_call.1} parent=1 // pred_region
      %s752 = ssub.s32 256, 256
      %753 = vsyncadd [#allocation4], %s752
      %s754 = sshll.u32 [#allocation8], 4
      %s755 = int_to_ptr.vmem [resolvable:$true] %s754
      %760 = dma.vmem_to_hbm [thread:$0]  %s755, 256, %s3, [#allocation4], 128, 128, 8
    $region29: #{tpu_custom_call.1} parent=1 // pred_fallthru
      _
    // Predicated region
    $region30: #{tpu_custom_call.1} parent=1 // pred_check
      _
    $region31: #{tpu_custom_call.1} parent=1 // pred_check_branch
      %762 = sbr.rel (0) target = $region33
    $region32: #{tpu_custom_call.1} parent=1 // pred_region
      %763 = dma.done [#allocation4], 256
    $region33: #{tpu_custom_call.1} parent=1 // pred_fallthru
      _
    %764 = vsyncpa [#allocation3], 1
    %765 = vsyncpa [#allocation6], 1
    %766 = vsyncpa [#allocation4], 1

</llo_original>
